<compile_context>
chip_gen: v7x
topology: tpu7x:2x2x1
jax: 0.10.0
libtpu: 0.0.40
codegen_flags: <defaults>
</compile_context>

<pallas_src>
import jax
import jax.numpy as jnp
from jax.experimental import pallas as pl
from jax.experimental.pallas import tpu as pltpu


def _linear_hsig_kernel(x_ref, w_ref, b_ref, o_ref):
    # x: (B, IN), w: (IN, OUT) pre-transposed weight, b: (1, OUT) = bias + 3.
    # Whole arrays are resident in VMEM; single MXU contraction, VPU epilogue.
    acc = jax.lax.dot_general(
        x_ref[...], w_ref[...],
        dimension_numbers=(((1,), (0,)), ((), ())),
        preferred_element_type=jnp.float32,
    )
    v = acc + b_ref[...]
    v = jnp.clip(v, 0.0, 6.0) * (1.0 / 6.0)
    o_ref[...] = v.astype(o_ref.dtype)


def prepare_params(weight, bias):
    """One-time static parameter transform (hoisted out of the hot path):
    pre-transpose weight (OUT, IN) -> (IN, OUT) and fold the hardsigmoid +3
    into the bias."""
    w_t = jnp.asarray(weight).T                         # (IN, OUT)
    b3 = (jnp.asarray(bias) + 3.0).reshape(1, -1)       # (1, OUT)
    return w_t, b3


@jax.jit
def linear_hardsig(x, w_t, b3):
    """y = clamp(x @ w_t + b3, 0, 6) / 6  ==  hardsigmoid-style epilogue of Linear."""
    B, IN = x.shape
    OUT = w_t.shape[1]
    itemsize = jnp.dtype(x.dtype).itemsize
    cost = pl.CostEstimate(
        flops=2 * B * IN * OUT,
        transcendentals=0,
        bytes_accessed=itemsize * (B * IN + IN * OUT + OUT + B * OUT),
    )
    return pl.pallas_call(
        _linear_hsig_kernel,
        out_shape=jax.ShapeDtypeStruct((B, OUT), x.dtype),
        in_specs=[
            pl.BlockSpec(memory_space=pltpu.MemorySpace.VMEM),  # x  (B, IN)
            pl.BlockSpec(memory_space=pltpu.MemorySpace.VMEM),  # wT (IN, OUT)
            pl.BlockSpec(memory_space=pltpu.MemorySpace.VMEM),  # b3 (1, OUT)
        ],
        out_specs=pl.BlockSpec(memory_space=pltpu.MemorySpace.VMEM),
        cost_estimate=cost,
    )(x, w_t, b3)


if __name__ == "__main__":
    key = jax.random.PRNGKey(0)
    kx, kw, kb = jax.random.split(key, 3)

    # Shapes implied by the PyTorch module: x1 = randn(1, 64), Linear(64, 8).
    B, IN, OUT = 1, 64, 8
    x1 = jax.random.normal(kx, (B, IN), dtype=jnp.float32)
    # Deterministic init mimicking nn.Linear default (uniform in +-1/sqrt(IN))
    bound = 1.0 / (IN ** 0.5)
    weight = jax.random.uniform(kw, (OUT, IN), minval=-bound, maxval=bound,
                                dtype=jnp.float32)
    bias = jax.random.uniform(kb, (OUT,), minval=-bound, maxval=bound,
                              dtype=jnp.float32)

    # One-time parameter prep (static transforms off the hot path).
    w_t, b3 = prepare_params(weight, bias)

    out = linear_hardsig(x1, w_t, b3)
    out = jax.block_until_ready(out)

    # Reference check in plain JAX
    ref = jnp.clip(x1 @ weight.T + bias + 3.0, 0.0, 6.0) / 6.0
    assert out.shape == (B, OUT)
    assert jnp.allclose(out, ref, atol=1e-5, rtol=1e-5)

    print("KERNEL_OK")
</pallas_src>

<mosaic_0001>
module attributes {stable_mosaic.version = 11 : i64} {
  func.func @_linear_hsig_kernel(%arg0: memref<1x64xf32, #tpu.memory_space<vmem>>, %arg1: memref<64x8xf32, #tpu.memory_space<vmem>>, %arg2: memref<1x8xf32, #tpu.memory_space<vmem>>, %arg3: memref<1x8xf32, #tpu.memory_space<vmem>>) attributes {dimension_semantics = [], scalar_prefetch = 0 : i64, scratch_operands = 0 : i64, tpu.core_type = #tpu.core_type<tc>} {
    %c0 = arith.constant 0 : index
    %c0_0 = arith.constant 0 : index
    %0 = vector.load %arg0[%c0, %c0_0] : memref<1x64xf32, #tpu.memory_space<vmem>>, vector<1x64xf32>
    %c0_1 = arith.constant 0 : index
    %c0_2 = arith.constant 0 : index
    %1 = vector.load %arg1[%c0_1, %c0_2] : memref<64x8xf32, #tpu.memory_space<vmem>>, vector<64x8xf32>
    %cst = arith.constant dense<0.000000e+00> : vector<1x8xf32>
    %2 = tpu.matmul %0, %1, %cst {dimension_numbers = #tpu.dot_dimension_numbers<[1], [0], [0], [1], [0, 0, 1, 1], [], []>} : vector<1x64xf32>, vector<64x8xf32>, vector<1x8xf32> -> vector<1x8xf32>
    %c0_3 = arith.constant 0 : index
    %c0_4 = arith.constant 0 : index
    %3 = vector.load %arg2[%c0_3, %c0_4] : memref<1x8xf32, #tpu.memory_space<vmem>>, vector<1x8xf32>
    %4 = arith.addf %2, %3 : vector<1x8xf32>
    %cst_5 = arith.constant 0.000000e+00 : f32
    %cst_6 = arith.constant 6.000000e+00 : f32
    %5 = vector.broadcast %cst_5 : f32 to vector<1x8xf32>
    %6 = arith.maximumf %5, %4 : vector<1x8xf32>
    %7 = vector.broadcast %cst_6 : f32 to vector<1x8xf32>
    %8 = arith.minimumf %7, %6 : vector<1x8xf32>
    %cst_7 = arith.constant 0.166666672 : f32
    %9 = vector.broadcast %cst_7 : f32 to vector<1x8xf32>
    %10 = arith.mulf %8, %9 : vector<1x8xf32>
    %c0_8 = arith.constant 0 : index
    %c0_9 = arith.constant 0 : index
    %11 = vector.load %arg3[%c0_8, %c0_9] : memref<1x8xf32, #tpu.memory_space<vmem>>, vector<1x8xf32>
    tpu.vector_store %arg3[%c0_8, %c0_9], %10 {strides = array<i32>} : memref<1x8xf32, #tpu.memory_space<vmem>>, vector<1x8xf32>,
    return
  }
}

</mosaic_0001>

<llo_original>
// kernel: linear_hardsig.1
$region0: #{linear_hardsig.1}
  #allocation0 [shape = 'u32[]', space=smem, size = 0x4, offset = 0x4, fixed_abs, tag = 'smem constant byte address 0x4 - core index']
  #allocation1 [shape = 'u32[144,128]{1,0:T(1,128)}', space=vmem, size = 0x12000, scoped, tag = 'internal scratch']
  %s0 = inlined_call_operand.vmem [shape: f32[1,64], index: 0, kind: input, shape index: {}]
  %s1 = inlined_call_operand.vmem [shape: f32[64,8], index: 1, kind: input, shape index: {}]
  %s2 = inlined_call_operand.vmem [shape: f32[1,8], index: 2, kind: input, shape index: {}]
  %s3 = inlined_call_operand.hbm [shape: f32[1,8], index: 3, kind: output, shape index: {}]
  %s4 = sld [smem:[#allocation0]]
  $region22: #{linear_hardsig.1} parent=0
    _
  %s6 = ssub.s32 1, %s4
  %s7 = scalar_select 0, %s6, %s4
  $region1: #{linear_hardsig.1} parent=0
    #allocation2 [shape = 'u8[512]{0}', space=vmem, size = 0x400, scoped, tag = 'output window, operand 0, single buffered']
    #allocation3 [shape = 's32[1]{0}', space=sflag, size = 0x4, scoped, tag = 'scoped memory for linear_hardsig.1']
    %8 = vsyncpa [#allocation3], 0
    // Predicated region
    $region2: #{linear_hardsig.1} parent=1 // pred_check
      _
    $region3: #{linear_hardsig.1} parent=1 // pred_check_branch
      %10 = sbr.rel (0) target = $region5
    $region4: #{linear_hardsig.1} parent=1 // pred_region
      _
    $region5: #{linear_hardsig.1} parent=1 // pred_fallthru
      _
    // Predicated region
    $region6: #{linear_hardsig.1} parent=1 // pred_check
      _
    $region7: #{linear_hardsig.1} parent=1 // pred_check_branch
      %12 = sbr.rel (0) target = $region9
    $region8: #{linear_hardsig.1} parent=1 // pred_region
      _
    $region9: #{linear_hardsig.1} parent=1 // pred_fallthru
      _
    // Predicated region
    $region10: #{linear_hardsig.1} parent=1 // pred_check
      _
    $region11: #{linear_hardsig.1} parent=1 // pred_check_branch
      %14 = sbr.rel (0) target = $region13
    $region12: #{linear_hardsig.1} parent=1 // pred_region
      _
    $region13: #{linear_hardsig.1} parent=1 // pred_fallthru
      _
    %v15 = vld [vmem:[%s0] sm:$0x1]
    %v16 = vld [vmem:[%s1] sm:$0xff]
    %v17 = vld [vmem:[%s1 + $0x8] sm:$0xff]
    %v18 = vld [vmem:[%s1 + $0x10] sm:$0xff]
    %v19 = vld [vmem:[%s1 + $0x18] sm:$0xff]
    %v20 = vld [vmem:[%s1 + $0x20] sm:$0xff]
    %v21 = vld [vmem:[%s1 + $0x28] sm:$0xff]
    %v22 = vld [vmem:[%s1 + $0x30] sm:$0xff]
    %v23 = vld [vmem:[%s1 + $0x38] sm:$0xff]
    %v24 = vld [vmem:[%s2] sm:$0x1]
    %vm25 = vcmask 523264
    %v27 = vsel %vm25, %v15, 0
    %29 = vmatprep.subr.mxu0 0.0
    %30 = vmatpush1.msra.mxu0 %v16
    %31 = vmatprep.subr.mxu0 0.0
    %32 = vmatpush1.msra.mxu0 %v17
    %33 = vmatprep.subr.mxu0 0.0
    %34 = vmatpush1.msra.mxu0 %v18
    %35 = vmatprep.subr.mxu0 0.0
    %36 = vmatpush1.msra.mxu0 %v19
    %37 = vmatprep.subr.mxu0 0.0
    %38 = vmatpush1.msra.mxu0 %v20
    %39 = vmatprep.subr.mxu0 0.0
    %40 = vmatpush1.msra.mxu0 %v21
    %41 = vmatprep.subr.mxu0 0.0
    %42 = vmatpush1.msra.mxu0 %v22
    %43 = vmatprep.subr.mxu0 0.0
    %44 = vmatpush1.msra.mxu0 %v23
    %45 = vmatprep.subr.mxu0 0.0
    %46 = vmatpush1.msra.mxu0 0.0
    %47 = vmatprep.subr.mxu0 0.0
    %48 = vmatpush1.msra.mxu0 0.0
    %49 = vmatprep.subr.mxu0 0.0
    %50 = vmatpush1.msra.mxu0 0.0
    %51 = vmatprep.subr.mxu0 0.0
    %52 = vmatpush1.msra.mxu0 0.0
    %53 = vmatprep.subr.mxu0 0.0
    %54 = vmatpush1.msra.mxu0 0.0
    %55 = vmatprep.subr.mxu0 0.0
    %56 = vmatpush1.msra.mxu0 0.0
    %57 = vmatprep.subr.mxu0 0.0
    %58 = vmatpush1.msra.mxu0 0.0
    %59 = vmatprep.subr.mxu0 0.0
    %60 = vmatpush1.msra.mxu0 0.0
    %61 = vmatprep.subr.mxu0 0.0
    %62 = vmatpush1.msra.mxu0 0.0
    %63 = vmatprep.subr.mxu0 0.0
    %64 = vmatpush1.msra.mxu0 0.0
    %65 = vmatprep.subr.mxu0 0.0
    %66 = vmatpush1.msra.mxu0 0.0
    %67 = vmatprep.subr.mxu0 0.0
    %68 = vmatpush1.msra.mxu0 0.0
    %69 = vmatprep.subr.mxu0 0.0
    %70 = vmatpush1.msra.mxu0 0.0
    %71 = vmatprep.subr.mxu0 0.0
    %72 = vmatpush1.msra.mxu0 0.0
    %73 = vmatprep.subr.mxu0 0.0
    %74 = vmatpush1.msra.mxu0 0.0
    %75 = vmatprep.subr.mxu0 0.0
    %76 = vmatpush1.msra.mxu0 0.0
    %77 = vmatprep.subr.mxu0 0.0
    %78 = vmatpush1.msra.mxu0 0.0
    %79 = vmatprep.subr.mxu0 0.0
    %80 = vmatpush1.msra.mxu0 0.0
    %81 = vmatprep.subr.mxu0 0.0
    %82 = vmatpush1.msra.mxu0 0.0
    %83 = vmatprep.subr.mxu0 0.0
    %84 = vmatpush1.msra.mxu0 0.0
    %85 = vmatprep.subr.mxu0 0.0
    %86 = vmatpush1.msra.mxu0 0.0
    %87 = vmatprep.subr.mxu0 0.0
    %88 = vmatpush1.msra.mxu0 0.0
    %89 = vmatprep.subr.mxu0 0.0
    %90 = vmatpush1.msra.mxu0 0.0
    %91 = vmatprep.subr.mxu0 0.0
    %92 = vmatpush1.msra.mxu0 0.0
    %93 = vmatprep.mubr.f32.mxu0 0.0
    %94 = vmatmul.mubr.f32.gmra.mrb[0].mxu0 %v27
    %v95 = vpop.f32.mrb[0].mxu0
    %v96 = vadd.f32 %v24, %v95
    %v97 = vpop.f32.mrb[0].mxu0
    %98 = vdwg.mxu0
    %v99 = vmax.f32 %v96, 0.0
    %v100 = vmin.f32 %v99, 6.0
    %v101 = vmul.f32 %v100, 0.16666667
    %vm102 = vcmask 57344
    %103 = vst.msk [vmem:[#allocation2] sm:$0x1] %vm102, %v101
    // Predicated region
    $region14: #{linear_hardsig.1} parent=1 // pred_check
      _
    $region15: #{linear_hardsig.1} parent=1 // pred_check_branch
      %105 = sbr.rel (0) target = $region17
    $region16: #{linear_hardsig.1} parent=1 // pred_region
      %s107 = ssub.s32 16, 16
      %108 = vsyncadd [#allocation3], %s107
      %s110 = sshll.u32 [#allocation2], 4
      %s111 = int_to_ptr.vmem [resolvable:$true] %s110
      %113 = dma.vmem_to_hbm [thread:$0]  %s111, 16, %s3, [#allocation3]
    $region17: #{linear_hardsig.1} parent=1 // pred_fallthru
      _
    // Predicated region
    $region18: #{linear_hardsig.1} parent=1 // pred_check
      _
    $region19: #{linear_hardsig.1} parent=1 // pred_check_branch
      %115 = sbr.rel (0) target = $region21
    $region20: #{linear_hardsig.1} parent=1 // pred_region
      %116 = dma.done [#allocation3], 16
    $region21: #{linear_hardsig.1} parent=1 // pred_fallthru
      _
    %117 = vsyncpa [#allocation3], 1

</llo_original>
